<compile_context>
chip_gen: v7x
topology: tpu7x:2x2x1
jax: 0.10.0
libtpu: 0.0.40
codegen_flags: <defaults>
</compile_context>

<pallas_src>
import math

import jax
import jax.numpy as jnp
from jax.experimental import pallas as pl
from jax.experimental.pallas import tpu as pltpu


def _round_up(x, m):
    return ((x + m - 1) // m) * m


def _vmem_limit_bytes():
    """Per-generation scoped-VMEM limit: ~3/4 of the per-core physical VMEM,
    capped at 100 MiB (v5e/v6e: 128 MiB -> 96 MiB; v7x: 64 MiB -> 48 MiB)."""
    try:
        cap = int(pltpu.get_tpu_info().vmem_capacity_bytes)
    except Exception:
        cap = 64 * 1024 * 1024          # conservative fallback (v7x per-TC)
    return min((cap * 3) // 4, 100 * 1024 * 1024)


_VMEM_LIMIT_BYTES = _vmem_limit_bytes()
_VMEM_HEADROOM_BYTES = 2 * 1024 * 1024   # Mosaic internal scratch slack


def _plan_tiles(n, fin_aug, h_pad, c_pad):
    """Pick a row tile tm (multiple of 16: bf16 sublane tile) and a padded row
    count n_pad such that the double-buffered bf16 (tm, n_pad) operator tile,
    the LANE-PADDED resident [x|1]/h blocks, the small weights and the output
    tile all fit within the per-generation VMEM limit, while keeping >= 4 grid
    steps whenever the graph is big enough (>= 2 steps per v7x TensorCore so
    each core still double-buffers its operator DMAs)."""
    for tm in (512, 256, 128, 64, 32, 16):
        n_pad = _round_up(n, tm)
        steps = n_pad // tm
        if steps < 4 and _round_up(n, 16) // 16 >= 4:
            continue                                     # insist on >= 4 steps
        a_tile = 2 * tm * n_pad * 2                      # 2 bufs, bf16 operator
        resident = 2 * n_pad * 128 * 2                   # [x|1] / h, lane-padded
        weights = (fin_aug * h_pad + h_pad * c_pad) * 2 + c_pad * 4
        out_tile = 2 * tm * max(h_pad, c_pad) * 4        # 2 bufs, f32 worst case
        if (a_tile + resident + weights + out_tile
                + _VMEM_HEADROOM_BYTES) <= _VMEM_LIMIT_BYTES:
            return tm, n_pad
    # TODO(synk): for graphs so large that even tm=16 plus the resident blocks
    # do not fit, add a contraction-axis grid with an f32 VMEM accumulator
    # (pl.when init/finalize, axis "arbitrary") instead of keeping x/h resident.
    return 16, _round_up(n, 16)


def gwnn_pass1_kernel(a_ref, xa_ref, w1k_ref, h_ref):
    """h_tile = (A_tile @ [x | 1]) @ [kern*W1 ; kern*b1]   (all folds exact).

    The ones-column / bias-row fold makes the first MXU matmul produce
    rowsum(A) for free, so there is no in-kernel cross-lane reduction and no
    f32 copy of the streamed (tm, N) operator tile."""
    ax = jnp.dot(a_ref[...], xa_ref[...],
                 preferred_element_type=jnp.float32)            # (tm, fin+1) f32
    h_ref[...] = jnp.dot(ax.astype(jnp.bfloat16), w1k_ref[...],
                         preferred_element_type=jnp.float32
                         ).astype(h_ref.dtype)                  # (tm, h_pad)


def gwnn_pass2_kernel(ainv_ref, h_ref, w3_ref, b3_ref, o_ref):
    """out_tile = relu(Ainv_tile @ h) @ W3_pad + b3_pad (lane-dense store)."""
    z = jnp.dot(ainv_ref[...], h_ref[...],
                preferred_element_type=jnp.float32)             # (tm, h_pad) f32
    z = jnp.maximum(z, 0.0).astype(jnp.bfloat16)                # bf16 MXU feed
    o_ref[...] = (jnp.dot(z, w3_ref[...],
                          preferred_element_type=jnp.float32)
                  + b3_ref[...])                                # (tm, c_pad) f32


@jax.jit
def gwnn_forward(x, a_norm, ainv_norm, w1, b1, kernel, w3, b3):
    n, fin = x.shape
    h_feats = w1.shape[1]
    num_classes = w3.shape[1]

    fin_aug = fin + 1                        # ones column for the bias fold
    h_pad = _round_up(h_feats, 128)          # lane-dense intermediate slab
    c_pad = _round_up(num_classes, 128)      # lane-dense classifier slab
    tm, n_pad = _plan_tiles(n, fin_aug, h_pad, c_pad)
    grid = (n_pad // tm,)
    dn = n_pad - n

    # Bandwidth-dominant dense operators in bf16 (half the HBM traffic, native
    # MXU feed); zero row/col padding keeps the math exact.
    # TODO(synk): optional fp8 (v7x) / int8 (v5e/v6e) A/Ainv with per-row
    # scales would halve the dominant HBM stream again (accuracy unvalidated).
    a_bf = jnp.pad(a_norm, ((0, dn), (0, dn))).astype(jnp.bfloat16)
    ainv_bf = jnp.pad(ainv_norm, ((0, dn), (0, dn))).astype(jnp.bfloat16)

    # Ones-column fold: A @ [x | 1] = [A@x | rowsum(A)].
    x_aug = jnp.concatenate([x, jnp.ones((n, 1), x.dtype)], axis=1)
    x_aug = jnp.pad(x_aug, ((0, dn), (0, 0))).astype(jnp.bfloat16)

    # Fold the diagonal spectral kernel through the conv (exact:
    # kern * (A @ (x@W1 + b1)) == A @ (x @ (W1*kern) + b1*kern)), append the
    # bias row under the ones column, pad features to the 128-lane slab.
    w1k = jnp.concatenate([w1 * kernel[None, :], (b1 * kernel)[None, :]], axis=0)
    w1k = jnp.pad(w1k, ((0, 0), (0, h_pad - h_feats))).astype(jnp.bfloat16)

    # Classifier padded to (h_pad, c_pad); zero rows/cols are exact no-ops.
    w3_p = jnp.pad(w3, ((0, h_pad - h_feats),
                        (0, c_pad - num_classes))).astype(jnp.bfloat16)
    b3_p = jnp.pad(b3, (0, c_pad - num_classes)).reshape(1, c_pad)

    compiler_params = pltpu.CompilerParams(
        dimension_semantics=("parallel",),          # v7x dual-TC row sharding
        vmem_limit_bytes=_VMEM_LIMIT_BYTES,
    )

    # ---- Pass 1: h = kern * (A @ (x @ W1 + b1)) -> (n_pad, h_pad) bf16 ------
    cost1 = pl.CostEstimate(
        flops=2 * n_pad * n_pad * fin_aug + 2 * n_pad * fin_aug * h_pad,
        transcendentals=0,
        bytes_accessed=(n_pad * n_pad * 2 + n_pad * fin_aug * 2
                        + fin_aug * h_pad * 2 + n_pad * h_pad * 2),
    )
    h_mid = pl.pallas_call(
        gwnn_pass1_kernel,
        out_shape=jax.ShapeDtypeStruct((n_pad, h_pad), jnp.bfloat16),
        grid_spec=pltpu.PrefetchScalarGridSpec(
            num_scalar_prefetch=0,
            grid=grid,
            in_specs=[
                pl.BlockSpec((tm, n_pad), lambda i: (i, 0)),       # A row tile
                pl.BlockSpec((n_pad, fin_aug), lambda i: (0, 0)),  # [x|1] res.
                pl.BlockSpec((fin_aug, h_pad), lambda i: (0, 0)),  # [W1k; b1k]
            ],
            out_specs=pl.BlockSpec((tm, h_pad), lambda i: (i, 0)),
        ),
        compiler_params=compiler_params,
        cost_estimate=cost1,
    )(a_bf, x_aug, w1k)

    # ---- Pass 2: out = relu(Ainv @ h) @ W3 + b3 -> (n_pad, c_pad) f32 -------
    cost2 = pl.CostEstimate(
        flops=(2 * n_pad * n_pad * h_pad + 2 * n_pad * h_pad * c_pad
               + n_pad * h_pad + n_pad * c_pad),
        transcendentals=0,
        bytes_accessed=(n_pad * n_pad * 2 + n_pad * h_pad * 2
                        + h_pad * c_pad * 2 + c_pad * 4 + n_pad * c_pad * 4),
    )
    out_padded = pl.pallas_call(
        gwnn_pass2_kernel,
        out_shape=jax.ShapeDtypeStruct((n_pad, c_pad), jnp.float32),
        grid_spec=pltpu.PrefetchScalarGridSpec(
            num_scalar_prefetch=0,
            grid=grid,
            in_specs=[
                pl.BlockSpec((tm, n_pad), lambda i: (i, 0)),       # Ainv tile
                pl.BlockSpec((n_pad, h_pad), lambda i: (0, 0)),    # h resident
                pl.BlockSpec((h_pad, c_pad), lambda i: (0, 0)),    # W3 (padded)
                pl.BlockSpec((1, c_pad), lambda i: (0, 0)),        # b3 (padded)
            ],
            out_specs=pl.BlockSpec((tm, c_pad), lambda i: (i, 0)),
        ),
        compiler_params=compiler_params,
        cost_estimate=cost2,
    )(ainv_bf, h_mid, w3_p, b3_p)

    return out_padded[:n, :num_classes]


def make_normalized_adjacency(key, n):
    """Synthetic stand-in for a DGL graph with positive edge weights under
    GraphConv(norm='both'): D^{-1/2} W D^{-1/2}."""
    w = jnp.abs(jax.random.normal(key, (n, n), dtype=jnp.float32)) + 1e-3
    deg = jnp.sum(w, axis=1)
    d_inv_sqrt = 1.0 / jnp.sqrt(deg)
    return (d_inv_sqrt[:, None] * w) * d_inv_sqrt[None, :]


def reference_forward(x, a_norm, ainv_norm, w1, b1, kernel, w3, b3):
    h = x @ w1 + b1
    h = a_norm @ h
    h = kernel * h
    h = ainv_norm @ h
    h = jnp.maximum(h, 0.0)
    return h @ w3 + b3


if __name__ == "__main__":
    # Small shapes consistent with the module's forward:
    #   N nodes, in_feats=16, h_feats=32, num_classes=8
    # N=256 -> a 4-step row grid, exercising the tiled/pipelined path.
    N, IN_FEATS, H_FEATS, NUM_CLASSES = 256, 16, 32, 8

    key = jax.random.PRNGKey(0)
    k_x, k_a, k_ai, k_w1, k_b1, k_k, k_w3, k_b3 = jax.random.split(key, 8)

    # Input node features.
    # TODO(synk): training-mode dropout (p=0.5) not modeled; eval semantics used.
    x = jax.random.normal(k_x, (N, IN_FEATS), dtype=jnp.float32)

    # Wavelet basis and inverse wavelet basis as dense normalized operators.
    a_norm = make_normalized_adjacency(k_a, N)
    ainv_norm = make_normalized_adjacency(k_ai, N)

    # Deterministic parameter init (shapes from __init__), stored transposed
    # for x @ W layout.
    lim1 = 1.0 / math.sqrt(IN_FEATS)
    w1 = jax.random.uniform(k_w1, (IN_FEATS, H_FEATS), jnp.float32, -lim1, lim1)
    b1 = jax.random.uniform(k_b1, (H_FEATS,), jnp.float32, -lim1, lim1)

    kernel = (jax.random.normal(k_k, (H_FEATS,), dtype=jnp.float32)
              / math.sqrt(H_FEATS))

    lim3 = 1.0 / math.sqrt(H_FEATS)
    w3 = jax.random.uniform(k_w3, (H_FEATS, NUM_CLASSES), jnp.float32, -lim3, lim3)
    b3 = jax.random.uniform(k_b3, (NUM_CLASSES,), jnp.float32, -lim3, lim3)

    out = gwnn_forward(x, a_norm, ainv_norm, w1, b1, kernel, w3, b3)
    out = jax.block_until_ready(out)

    # Reference in f32 using the same bf16-rounded bandwidth operands the
    # kernel sees; remaining deltas are reassociation + bf16 intermediates and
    # bf16-rounded small weights (folded kernel/bias, classifier).
    ref = reference_forward(
        x.astype(jnp.bfloat16).astype(jnp.float32),
        a_norm.astype(jnp.bfloat16).astype(jnp.float32),
        ainv_norm.astype(jnp.bfloat16).astype(jnp.float32),
        w1, b1, kernel, w3, b3)

    assert out.shape == (N, NUM_CLASSES)
    assert jnp.allclose(out, ref, atol=2e-2, rtol=2e-2), (
        float(jnp.max(jnp.abs(out - ref))))

    print("KERNEL_OK")
</pallas_src>

<mosaic_0001>
module attributes {stable_mosaic.version = 11 : i64} {
  func.func @gwnn_pass1_kernel(%arg0: i32, %arg1: memref<64x256xbf16, #tpu.memory_space<vmem>>, %arg2: memref<256x17xbf16, #tpu.memory_space<vmem>>, %arg3: memref<17x128xbf16, #tpu.memory_space<vmem>>, %arg4: memref<64x128xbf16, #tpu.memory_space<vmem>>) attributes {dimension_semantics = [#tpu.dimension_semantics<parallel>], iteration_bounds = array<i64: 4>, scalar_prefetch = 0 : i64, scratch_operands = 0 : i64, tpu.core_type = #tpu.core_type<tc>, window_params = [{transform_indices = @transform_0, window_bounds = array<i64: 64, 256>}, {pipeline_mode = #tpu.pipeline_mode<synchronous>, transform_indices = @transform_1, window_bounds = array<i64: 256, 17>}, {pipeline_mode = #tpu.pipeline_mode<synchronous>, transform_indices = @transform_2, window_bounds = array<i64: 17, 128>}, {transform_indices = @transform_3, window_bounds = array<i64: 64, 128>}]} {
    %c0 = arith.constant 0 : index
    %c0_0 = arith.constant 0 : index
    %0 = vector.load %arg1[%c0, %c0_0] : memref<64x256xbf16, #tpu.memory_space<vmem>>, vector<64x256xbf16>
    %c0_1 = arith.constant 0 : index
    %c0_2 = arith.constant 0 : index
    %1 = vector.load %arg2[%c0_1, %c0_2] : memref<256x17xbf16, #tpu.memory_space<vmem>>, vector<256x17xbf16>
    %cst = arith.constant dense<0.000000e+00> : vector<64x17xf32>
    %2 = tpu.matmul %0, %1, %cst {dimension_numbers = #tpu.dot_dimension_numbers<[1], [0], [0], [1], [0, 0, 1, 1], [], []>} : vector<64x256xbf16>, vector<256x17xbf16>, vector<64x17xf32> -> vector<64x17xf32>
    %3 = arith.truncf %2 : vector<64x17xf32> to vector<64x17xbf16>
    %c0_3 = arith.constant 0 : index
    %c0_4 = arith.constant 0 : index
    %4 = vector.load %arg3[%c0_3, %c0_4] : memref<17x128xbf16, #tpu.memory_space<vmem>>, vector<17x128xbf16>
    %cst_5 = arith.constant dense<0.000000e+00> : vector<64x128xf32>
    %5 = tpu.matmul %3, %4, %cst_5 {dimension_numbers = #tpu.dot_dimension_numbers<[1], [0], [0], [1], [0, 0, 1, 1], [], []>} : vector<64x17xbf16>, vector<17x128xbf16>, vector<64x128xf32> -> vector<64x128xf32>
    %6 = arith.truncf %5 : vector<64x128xf32> to vector<64x128xbf16>
    %c0_6 = arith.constant 0 : index
    %c0_7 = arith.constant 0 : index
    %7 = vector.load %arg4[%c0_6, %c0_7] : memref<64x128xbf16, #tpu.memory_space<vmem>>, vector<64x128xbf16>
    tpu.vector_store %arg4[%c0_6, %c0_7], %6 {strides = array<i32>} : memref<64x128xbf16, #tpu.memory_space<vmem>>, vector<64x128xbf16>,
    return
  }
  func.func @transform_0(%arg0: i32) -> (i32, i32) {
    %c0_i32 = arith.constant 0 : i32
    %c0_i32_0 = arith.constant 0 : i32
    return %arg0, %c0_i32 : i32, i32
  }
  func.func @transform_1(%arg0: i32) -> (i32, i32) {
    %c0_i32 = arith.constant 0 : i32
    %c0_i32_0 = arith.constant 0 : i32
    %c0_i32_1 = arith.constant 0 : i32
    return %c0_i32, %c0_i32_0 : i32, i32
  }
  func.func @transform_2(%arg0: i32) -> (i32, i32) {
    %c0_i32 = arith.constant 0 : i32
    %c0_i32_0 = arith.constant 0 : i32
    %c0_i32_1 = arith.constant 0 : i32
    return %c0_i32, %c0_i32_0 : i32, i32
  }
  func.func @transform_3(%arg0: i32) -> (i32, i32) {
    %c0_i32 = arith.constant 0 : i32
    %c0_i32_0 = arith.constant 0 : i32
    return %arg0, %c0_i32 : i32, i32
  }
}

module attributes {stable_mosaic.version = 11 : i64} {
  func.func @gwnn_pass2_kernel(%arg0: i32, %arg1: memref<64x256xbf16, #tpu.memory_space<vmem>>, %arg2: memref<256x128xbf16, #tpu.memory_space<vmem>>, %arg3: memref<128x128xbf16, #tpu.memory_space<vmem>>, %arg4: memref<1x128xf32, #tpu.memory_space<vmem>>, %arg5: memref<64x128xf32, #tpu.memory_space<vmem>>) attributes {dimension_semantics = [#tpu.dimension_semantics<parallel>], iteration_bounds = array<i64: 4>, scalar_prefetch = 0 : i64, scratch_operands = 0 : i64, tpu.core_type = #tpu.core_type<tc>, window_params = [{transform_indices = @transform_0, window_bounds = array<i64: 64, 256>}, {pipeline_mode = #tpu.pipeline_mode<synchronous>, transform_indices = @transform_1, window_bounds = array<i64: 256, 128>}, {pipeline_mode = #tpu.pipeline_mode<synchronous>, transform_indices = @transform_2, window_bounds = array<i64: 128, 128>}, {pipeline_mode = #tpu.pipeline_mode<synchronous>, transform_indices = @transform_3, window_bounds = array<i64: 1, 128>}, {transform_indices = @transform_4, window_bounds = array<i64: 64, 128>}]} {
    %c0 = arith.constant 0 : index
    %c0_0 = arith.constant 0 : index
    %0 = vector.load %arg1[%c0, %c0_0] : memref<64x256xbf16, #tpu.memory_space<vmem>>, vector<64x256xbf16>
    %c0_1 = arith.constant 0 : index
    %c0_2 = arith.constant 0 : index
    %1 = vector.load %arg2[%c0_1, %c0_2] : memref<256x128xbf16, #tpu.memory_space<vmem>>, vector<256x128xbf16>
    %cst = arith.constant dense<0.000000e+00> : vector<64x128xf32>
    %2 = tpu.matmul %0, %1, %cst {dimension_numbers = #tpu.dot_dimension_numbers<[1], [0], [0], [1], [0, 0, 1, 1], [], []>} : vector<64x256xbf16>, vector<256x128xbf16>, vector<64x128xf32> -> vector<64x128xf32>
    %cst_3 = arith.constant 0.000000e+00 : f32
    %3 = vector.broadcast %cst_3 : f32 to vector<64x128xf32>
    %4 = arith.maximumf %2, %3 : vector<64x128xf32>
    %5 = arith.truncf %4 : vector<64x128xf32> to vector<64x128xbf16>
    %c0_4 = arith.constant 0 : index
    %c0_5 = arith.constant 0 : index
    %6 = vector.load %arg3[%c0_4, %c0_5] : memref<128x128xbf16, #tpu.memory_space<vmem>>, vector<128x128xbf16>
    %cst_6 = arith.constant dense<0.000000e+00> : vector<64x128xf32>
    %7 = tpu.matmul %5, %6, %cst_6 {dimension_numbers = #tpu.dot_dimension_numbers<[1], [0], [0], [1], [0, 0, 1, 1], [], []>} : vector<64x128xbf16>, vector<128x128xbf16>, vector<64x128xf32> -> vector<64x128xf32>
    %c0_7 = arith.constant 0 : index
    %c0_8 = arith.constant 0 : index
    %8 = vector.load %arg4[%c0_7, %c0_8] : memref<1x128xf32, #tpu.memory_space<vmem>>, vector<1x128xf32>
    %9 = vector.broadcast %8 : vector<1x128xf32> to vector<64x128xf32>
    %10 = arith.addf %7, %9 : vector<64x128xf32>
    %c0_9 = arith.constant 0 : index
    %c0_10 = arith.constant 0 : index
    %11 = vector.load %arg5[%c0_9, %c0_10] : memref<64x128xf32, #tpu.memory_space<vmem>>, vector<64x128xf32>
    tpu.vector_store %arg5[%c0_9, %c0_10], %10 {strides = array<i32>} : memref<64x128xf32, #tpu.memory_space<vmem>>, vector<64x128xf32>,
    return
  }
  func.func @transform_0(%arg0: i32) -> (i32, i32) {
    %c0_i32 = arith.constant 0 : i32
    %c0_i32_0 = arith.constant 0 : i32
    return %arg0, %c0_i32 : i32, i32
  }
  func.func @transform_1(%arg0: i32) -> (i32, i32) {
    %c0_i32 = arith.constant 0 : i32
    %c0_i32_0 = arith.constant 0 : i32
    %c0_i32_1 = arith.constant 0 : i32
    return %c0_i32, %c0_i32_0 : i32, i32
  }
  func.func @transform_2(%arg0: i32) -> (i32, i32) {
    %c0_i32 = arith.constant 0 : i32
    %c0_i32_0 = arith.constant 0 : i32
    %c0_i32_1 = arith.constant 0 : i32
    return %c0_i32, %c0_i32_0 : i32, i32
  }
  func.func @transform_3(%arg0: i32) -> (i32, i32) {
    %c0_i32 = arith.constant 0 : i32
    %c0_i32_0 = arith.constant 0 : i32
    %c0_i32_1 = arith.constant 0 : i32
    return %c0_i32, %c0_i32_0 : i32, i32
  }
  func.func @transform_4(%arg0: i32) -> (i32, i32) {
    %c0_i32 = arith.constant 0 : i32
    %c0_i32_0 = arith.constant 0 : i32
    return %arg0, %c0_i32 : i32, i32
  }
}

</mosaic_0001>

<llo_original>
// kernel: gwnn_forward.2
$region0: #{gwnn_forward.2}
  #allocation0 [shape = 'u32[]', space=smem, size = 0x4, offset = 0x4, fixed_abs, tag = 'smem constant byte address 0x4 - core index']
  #allocation1 [shape = 'u32[144,128]{1,0:T(1,128)}', space=vmem, size = 0x12000, scoped, tag = 'internal scratch']
  %s0 = inlined_call_operand.vmem [shape: bf16[256,256], index: 0, kind: input, shape index: {}]
  %s1 = inlined_call_operand.vmem [shape: bf16[256,17], index: 1, kind: input, shape index: {}]
  %s2 = inlined_call_operand.vmem [shape: bf16[17,128], index: 2, kind: input, shape index: {}]
  %s3 = inlined_call_operand.vmem [shape: bf16[256,128], index: 3, kind: output, shape index: {}]
  %s4 = sld [smem:[#allocation0]]
  $region45: #{gwnn_forward.2} parent=0
    _
  %s6 = ssub.s32 1, %s4
  %s7 = scalar_select 0, %s6, %s4
  loop: start=0, step=1, limit=6
  $region2: #{gwnn_forward.2} parent=0 // loop_pre_header
    _
  $region3: #{gwnn_forward.2} parent=0 // loop_header
    %s9 = sphi 0, %s13
    %p10 = scmp.ge.s32.totalorder %s9, 6
    %s19 = sphi 0, %s21
    %s22 = sphi 0, %s19
    %s23 = sphi 0, %s22
    %s39 = sphi 0, %s23
    %s43 = sphi 0, %s43
    %s45 = sphi 0, %s43
    %s46 = sphi 0, %s45
    %s60 = sphi 0, %s46
    %s64 = sphi 0, %s64
    %s66 = sphi 0, %s64
    %s67 = sphi 0, %s66
    %s81 = sphi 0, %s67
    %s87 = sphi 0, %s89
    %s90 = sphi 0, %s87
    %s91 = sphi 0, %s90
    %s107 = sphi 0, %s91
  $region4: #{gwnn_forward.2} parent=0 // loop_header_branch
    %12 = sbr.rel (%p10) target = $region8
  $region5: #{gwnn_forward.2} parent=0 // loop_body
    %s14 = ssub.s32 %s9, 1
    %s15 = ssub.s32 %s9, 2
    %s16 = sadd.s32 %s9, 1
    %s17 = ssub.s32 %s9, %s16
    %p18 = scmp.eq.s32.totalorder %s17, 0
    %s20 = sadd.s32 %s19, 1
    %s21 = scalar_select %p18, %s19, %s20
    %p24 = pneg %p18
    %p25 = scmp.eq.s32.totalorder %s9, 3
    %p26 = por %p24, %p25
    %p27 = scmp.ne.s32.totalorder %s19, %s22
    %p28 = scmp.eq.s32.totalorder %s9, 0
    %p29 = por %p27, %p28
    %p30 = scmp.ne.s32.totalorder %s19, %s22
    %p31 = scmp.eq.s32.totalorder %s14, 3
    %p32 = por %p30, %p31
    %p33 = scmp.ne.s32.totalorder %s22, %s23
    %p34 = scmp.eq.s32.totalorder %s14, 0
    %p35 = por %p33, %p34
    %p36 = scmp.ne.s32.totalorder %s22, %s23
    %p37 = scmp.eq.s32.totalorder %s15, 3
    %p38 = por %p36, %p37
    %p40 = scmp.ne.s32.totalorder %s23, %s39
    %p41 = scmp.eq.s32.totalorder %s15, 0
    %p42 = por %p40, %p41
    %s44 = sadd.s32 %s43, 1
    %p47 = scmp.eq.s32.totalorder %s9, 3
    %p48 = scmp.ne.s32.totalorder %s43, %s45
    %p49 = scmp.eq.s32.totalorder %s9, 0
    %p50 = por %p48, %p49
    %p51 = scmp.ne.s32.totalorder %s43, %s45
    %p52 = scmp.eq.s32.totalorder %s14, 3
    %p53 = por %p51, %p52
    %p54 = scmp.ne.s32.totalorder %s45, %s46
    %p55 = scmp.eq.s32.totalorder %s14, 0
    %p56 = por %p54, %p55
    %p57 = scmp.ne.s32.totalorder %s45, %s46
    %p58 = scmp.eq.s32.totalorder %s15, 3
    %p59 = por %p57, %p58
    %p61 = scmp.ne.s32.totalorder %s46, %s60
    %p62 = scmp.eq.s32.totalorder %s15, 0
    %p63 = por %p61, %p62
    %s65 = sadd.s32 %s64, 1
    %p68 = scmp.eq.s32.totalorder %s9, 3
    %p69 = scmp.ne.s32.totalorder %s64, %s66
    %p70 = scmp.eq.s32.totalorder %s9, 0
    %p71 = por %p69, %p70
    %p72 = scmp.ne.s32.totalorder %s64, %s66
    %p73 = scmp.eq.s32.totalorder %s14, 3
    %p74 = por %p72, %p73
    %p75 = scmp.ne.s32.totalorder %s66, %s67
    %p76 = scmp.eq.s32.totalorder %s14, 0
    %p77 = por %p75, %p76
    %p78 = scmp.ne.s32.totalorder %s66, %s67
    %p79 = scmp.eq.s32.totalorder %s15, 3
    %p80 = por %p78, %p79
    %p82 = scmp.ne.s32.totalorder %s67, %s81
    %p83 = scmp.eq.s32.totalorder %s15, 0
    %p84 = por %p82, %p83
    %s85 = ssub.s32 %s9, %s16
    %p86 = scmp.eq.s32.totalorder %s85, 0
    %s88 = sadd.s32 %s87, 1
    %s89 = scalar_select %p86, %s87, %s88
    %p92 = pneg %p86
    %p93 = scmp.eq.s32.totalorder %s9, 3
    %p94 = por %p92, %p93
    %p95 = scmp.ne.s32.totalorder %s87, %s90
    %p96 = scmp.eq.s32.totalorder %s9, 0
    %p97 = por %p95, %p96
    %p98 = scmp.ne.s32.totalorder %s87, %s90
    %p99 = scmp.eq.s32.totalorder %s14, 3
    %p100 = por %p98, %p99
    %p101 = scmp.ne.s32.totalorder %s90, %s91
    %p102 = scmp.eq.s32.totalorder %s14, 0
    %p103 = por %p101, %p102
    %p104 = scmp.ne.s32.totalorder %s90, %s91
    %p105 = scmp.eq.s32.totalorder %s15, 3
    %p106 = por %p104, %p105
    %p108 = scmp.ne.s32.totalorder %s91, %s107
    %p109 = scmp.eq.s32.totalorder %s15, 0
    %p110 = por %p108, %p109
    %p111 = scmp.le.s32.totalorder 1, %s9
    %p112 = scmp.lt.s32.totalorder %s9, 5
    %p113 = pnand %p111, %p112
    %p114 = pneg %p113
    // Predicated region
    $region9: #{gwnn_forward.2} parent=5 // pred_check
      _
    $region10: #{gwnn_forward.2} parent=5 // pred_check_branch
      %116 = sbr.rel (%p113) target = $region12
    $region11: #{gwnn_forward.2} parent=5 // pred_region
      %s117 = ssub.s32 %s9, 1
      // Predicated region
      $region13: #{gwnn_forward.2} parent=11 // pred_check
        %p118 = pneg %p56
      $region14: #{gwnn_forward.2} parent=11 // pred_check_branch
        %120 = sbr.rel (%p118) target = $region16
      $region15: #{gwnn_forward.2} parent=11 // pred_region
        _
      $region16: #{gwnn_forward.2} parent=11 // pred_fallthru
        _
      // Predicated region
      $region17: #{gwnn_forward.2} parent=11 // pred_check
        %p121 = pneg %p77
      $region18: #{gwnn_forward.2} parent=11 // pred_check_branch
        %123 = sbr.rel (%p121) target = $region20
      $region19: #{gwnn_forward.2} parent=11 // pred_region
        _
      $region20: #{gwnn_forward.2} parent=11 // pred_fallthru
        _
    $region12: #{gwnn_forward.2} parent=5 // pred_fallthru
      _
    %p124 = scmp.lt.s32.totalorder %s9, 4
    // Predicated region
    $region21: #{gwnn_forward.2} parent=5 // pred_check
      %p125 = pneg %p124
    $region22: #{gwnn_forward.2} parent=5 // pred_check_branch
      %127 = sbr.rel (%p125) target = $region24
    $region23: #{gwnn_forward.2} parent=5 // pred_region
      // Predicated region
      $region25: #{gwnn_forward.2} parent=23 // pred_check
        %p128 = pneg %p29
      $region26: #{gwnn_forward.2} parent=23 // pred_check_branch
        %130 = sbr.rel (%p128) target = $region28
      $region27: #{gwnn_forward.2} parent=23 // pred_region
        %s131 = smul.u32 8, %s9
        %p132 = scmp.lt.s32.totalorder %s131, 31
        %s133 = scalar_select %p132, %s131, 31
        %s134 = smul.addr %s133, 2
        %s135 = smul.addr %s134, 4
        %s136 = scalar_lea.vmem %s0, %s135
        %s137 = smul.u32 8, %s9
      $region28: #{gwnn_forward.2} parent=23 // pred_fallthru
        _
    $region24: #{gwnn_forward.2} parent=5 // pred_fallthru
      _
    %p138 = scmp.le.s32.totalorder 1, %s9
    %p139 = scmp.lt.s32.totalorder %s9, 5
    %p140 = pnand %p138, %p139
    %p141 = pneg %p140
    // Predicated region
    $region29: #{gwnn_forward.2} parent=5 // pred_check
      _
    $region30: #{gwnn_forward.2} parent=5 // pred_check_branch
      %143 = sbr.rel (%p140) target = $region32
    $region31: #{gwnn_forward.2} parent=5 // pred_region
      %s144 = ssub.s32 %s9, 1
      %s145 = smul.u32 8, %s14
      %p146 = scmp.lt.s32.totalorder %s145, 31
      %s147 = scalar_select %p146, %s145, 31
      %s148 = smul.addr %s147, 2
      %s149 = smul.addr %s148, 4
      %s150 = scalar_lea.vmem %s0, %s149
      %p151 = pneg %p35
      %p152 = pneg %p32
      %p153 = pneg %p56
      %p154 = pneg %p53
      %p155 = pneg %p77
      %p156 = pneg %p74
      %p157 = pneg %p103
      %p158 = pneg %p100
      %s159 = smul.u32 8, %s14
      %p160 = scmp.lt.s32.totalorder %s159, 31
      %s161 = scalar_select %p160, %s159, 31
      %s162 = smul.addr %s161, 4
      %s163 = scalar_lea.vmem %s3, %s162
      %s164 = smul.u32 8, %s14
      %p165 = scmp.lt.s32.totalorder %s164, 31
      %s166 = scalar_select %p165, %s164, 31
      %s167 = smul.addr %s166, 2
      %s168 = smul.addr %s167, 4
      %s169 = scalar_lea.vmem %s0, %s168
      %s170 = smul.u32 8, %s14
      %s171 = smul.u32 8, %s14
      %p172 = scmp.lt.s32.totalorder %s171, 31
      %s173 = scalar_select %p172, %s171, 31
      %s174 = smul.addr %s173, 4
      %s175 = scalar_lea.vmem %s3, %s174
      %s176 = smul.u32 8, %s14
      %v178 = vld [vmem:[%s169] sm:$0xff]
      %v179 = vld [vmem:[%s169 + $0x8] sm:$0xff]
      %v180 = vld [vmem:[%s169 + $0x10] sm:$0xff]
      %v181 = vld [vmem:[%s169 + $0x18] sm:$0xff]
      %v182 = vld [vmem:[%s169 + $0x20] sm:$0xff]
      %v183 = vld [vmem:[%s169 + $0x28] sm:$0xff]
      %v184 = vld [vmem:[%s169 + $0x30] sm:$0xff]
      %v185 = vld [vmem:[%s169 + $0x38] sm:$0xff]
      %v186 = vld [vmem:[%s1] sm:$0xf]
      %v187 = vld [vmem:[%s1 + $0x4] sm:$0xf]
      %v188 = vld [vmem:[%s1 + $0x8] sm:$0xf]
      %v189 = vld [vmem:[%s1 + $0xc] sm:$0xf]
      %v190 = vld [vmem:[%s1 + $0x10] sm:$0xf]
      %v191 = vld [vmem:[%s1 + $0x14] sm:$0xf]
      %v192 = vld [vmem:[%s1 + $0x18] sm:$0xf]
      %v193 = vld [vmem:[%s1 + $0x1c] sm:$0xf]
      %v194 = vld [vmem:[%s1 + $0x20] sm:$0xf]
      %v195 = vld [vmem:[%s1 + $0x24] sm:$0xf]
      %v196 = vld [vmem:[%s1 + $0x28] sm:$0xf]
      %v197 = vld [vmem:[%s1 + $0x2c] sm:$0xf]
      %v198 = vld [vmem:[%s1 + $0x30] sm:$0xf]
      %v199 = vld [vmem:[%s1 + $0x34] sm:$0xf]
      %v200 = vld [vmem:[%s1 + $0x38] sm:$0xf]
      %v201 = vld [vmem:[%s1 + $0x3c] sm:$0xf]
      %v202 = vld [vmem:[%s1 + $0x40] sm:$0xf]
      %v203 = vld [vmem:[%s1 + $0x44] sm:$0xf]
      %v204 = vld [vmem:[%s1 + $0x48] sm:$0xf]
      %v205 = vld [vmem:[%s1 + $0x4c] sm:$0xf]
      %v206 = vld [vmem:[%s1 + $0x50] sm:$0xf]
      %v207 = vld [vmem:[%s1 + $0x54] sm:$0xf]
      %v208 = vld [vmem:[%s1 + $0x58] sm:$0xf]
      %v209 = vld [vmem:[%s1 + $0x5c] sm:$0xf]
      %v210 = vld [vmem:[%s1 + $0x60] sm:$0xf]
      %v211 = vld [vmem:[%s1 + $0x64] sm:$0xf]
      %v212 = vld [vmem:[%s1 + $0x68] sm:$0xf]
      %v213 = vld [vmem:[%s1 + $0x6c] sm:$0xf]
      %v214 = vld [vmem:[%s1 + $0x70] sm:$0xf]
      %v215 = vld [vmem:[%s1 + $0x74] sm:$0xf]
      %v216 = vld [vmem:[%s1 + $0x78] sm:$0xf]
      %v217 = vld [vmem:[%s1 + $0x7c] sm:$0xf]
      %v226 = vunpack.c.l.b16 %v178
      %v227 = vunpack.c.h.b16 %v178
      %v228 = vunpack.c.l.b16 %v179
      %v229 = vunpack.c.h.b16 %v179
      %v230 = vunpack.c.l.b16 %v180
      %v231 = vunpack.c.h.b16 %v180
      %v232 = vunpack.c.l.b16 %v181
      %v233 = vunpack.c.h.b16 %v181
      %v234 = vunpack.c.l.b16 %v182
      %v235 = vunpack.c.h.b16 %v182
      %v236 = vunpack.c.l.b16 %v183
      %v237 = vunpack.c.h.b16 %v183
      %v238 = vunpack.c.l.b16 %v184
      %v239 = vunpack.c.h.b16 %v184
      %v240 = vunpack.c.l.b16 %v185
      %v241 = vunpack.c.h.b16 %v185
      %v242 = vpack.c.b16 %v228, %v226
      %v243 = vpack.c.b16 %v229, %v227
      %v244 = vpack.c.b16 %v232, %v230
      %v245 = vpack.c.b16 %v233, %v231
      %v246 = vpack.c.b16 %v236, %v234
      %v247 = vpack.c.b16 %v237, %v235
      %v248 = vpack.c.b16 %v240, %v238
      %v249 = vpack.c.b16 %v241, %v239
      %v290 = vunpack.c.l.b16 %v186
      %v291 = vunpack.c.l.b16 %v187
      %v292 = vunpack.c.l.b16 %v188
      %v293 = vunpack.c.l.b16 %v189
      %v294 = vunpack.c.l.b16 %v190
      %v295 = vunpack.c.l.b16 %v191
      %v296 = vunpack.c.l.b16 %v192
      %v297 = vunpack.c.l.b16 %v193
      %v298 = vunpack.c.l.b16 %v194
      %v299 = vunpack.c.l.b16 %v195
      %v300 = vunpack.c.l.b16 %v196
      %v301 = vunpack.c.l.b16 %v197
      %v302 = vunpack.c.l.b16 %v198
      %v303 = vunpack.c.l.b16 %v199
      %v304 = vunpack.c.l.b16 %v200
      %v305 = vunpack.c.l.b16 %v201
      %v306 = vunpack.c.l.b16 %v202
      %v307 = vunpack.c.l.b16 %v203
      %v308 = vunpack.c.l.b16 %v204
      %v309 = vunpack.c.l.b16 %v205
      %v310 = vunpack.c.l.b16 %v206
      %v311 = vunpack.c.l.b16 %v207
      %v312 = vunpack.c.l.b16 %v208
      %v313 = vunpack.c.l.b16 %v209
      %v314 = vunpack.c.l.b16 %v210
      %v315 = vunpack.c.l.b16 %v211
      %v316 = vunpack.c.l.b16 %v212
      %v317 = vunpack.c.l.b16 %v213
      %v318 = vunpack.c.l.b16 %v214
      %v319 = vunpack.c.l.b16 %v215
      %v320 = vunpack.c.l.b16 %v216
      %v321 = vunpack.c.l.b16 %v217
      %v322 = vpack.c.b16 %v291, %v290
      %v323 = vpack.c.b16 %v293, %v292
      %v324 = vpack.c.b16 %v295, %v294
      %v325 = vpack.c.b16 %v297, %v296
      %v326 = vpack.c.b16 %v299, %v298
      %v327 = vpack.c.b16 %v301, %v300
      %v328 = vpack.c.b16 %v303, %v302
      %v329 = vpack.c.b16 %v305, %v304
      %v330 = vpack.c.b16 %v307, %v306
      %v331 = vpack.c.b16 %v309, %v308
      %v332 = vpack.c.b16 %v311, %v310
      %v333 = vpack.c.b16 %v313, %v312
      %v334 = vpack.c.b16 %v315, %v314
      %v335 = vpack.c.b16 %v317, %v316
      %v336 = vpack.c.b16 %v319, %v318
      %v337 = vpack.c.b16 %v321, %v320
      %354 = vmatprep.subr.bf16.mxu0 0
      %355 = vmatpush1.bf16.msra.mxu0 %v322
      %356 = vmatprep.subr.bf16.mxu0 0
      %357 = vmatpush1.bf16.msra.mxu0 %v323
      %358 = vmatprep.subr.bf16.mxu0 0
      %359 = vmatpush1.bf16.msra.mxu0 %v324
      %360 = vmatprep.subr.bf16.mxu0 0
      %361 = vmatpush1.bf16.msra.mxu0 %v325
      %362 = vmatprep.subr.bf16.mxu0 0
      %363 = vmatpush1.bf16.msra.mxu0 %v326
      %364 = vmatprep.subr.bf16.mxu0 0
      %365 = vmatpush1.bf16.msra.mxu0 %v327
      %366 = vmatprep.subr.bf16.mxu0 0
      %367 = vmatpush1.bf16.msra.mxu0 %v328
      %368 = vmatprep.subr.bf16.mxu0 0
      %369 = vmatpush1.bf16.msra.mxu0 %v329
      %370 = vmatprep.subr.bf16.mxu0 0
      %371 = vmatpush1.bf16.msra.mxu0 %v330
      %372 = vmatprep.subr.bf16.mxu0 0
      %373 = vmatpush1.bf16.msra.mxu0 %v331
      %374 = vmatprep.subr.bf16.mxu0 0
      %375 = vmatpush1.bf16.msra.mxu0 %v332
      %376 = vmatprep.subr.bf16.mxu0 0
      %377 = vmatpush1.bf16.msra.mxu0 %v333
      %378 = vmatprep.subr.bf16.mxu0 0
      %379 = vmatpush1.bf16.msra.mxu0 %v334
      %380 = vmatprep.subr.bf16.mxu0 0
      %381 = vmatpush1.bf16.msra.mxu0 %v335
      %382 = vmatprep.subr.bf16.mxu0 0
      %383 = vmatpush1.bf16.msra.mxu0 %v336
      %384 = vmatprep.subr.bf16.mxu0 0
      %385 = vmatpush1.bf16.msra.mxu0 %v337
      %386 = vmatprep.mubr.bf16.mxu0 %v243
      %387 = vmatmul.mubr.bf16.gmra.mrb[0].mxu0 %v242
      %v388 = vpop.f32.mrb[0].mxu0
      %v389 = vadd.f32 0.0, %v388
      %v390 = vpop.f32.mrb[0].mxu0
      %v391 = vpop.f32.mrb[0].mxu0
      %v392 = vadd.f32 0.0, %v391
      %v393 = vpop.f32.mrb[0].mxu0
      %394 = vmatprep.mubr.bf16.mxu0 %v245
      %395 = vmatmul.mubr.bf16.gmra.mrb[0].mxu0 %v244
      %v396 = vpop.f32.mrb[0].mxu0
      %v397 = vadd.f32 0.0, %v396
      %v398 = vpop.f32.mrb[0].mxu0
      %v399 = vpop.f32.mrb[0].mxu0
      %v400 = vadd.f32 0.0, %v399
      %v401 = vpop.f32.mrb[0].mxu0
      %402 = vmatprep.mubr.bf16.mxu0 %v247
      %403 = vmatmul.mubr.bf16.gmra.mrb[0].mxu0 %v246
      %v404 = vpop.f32.mrb[0].mxu0
      %v405 = vadd.f32 0.0, %v404
      %v406 = vpop.f32.mrb[0].mxu0
      %v407 = vpop.f32.mrb[0].mxu0
      %v408 = vadd.f32 0.0, %v407
      %v409 = vpop.f32.mrb[0].mxu0
      %410 = vmatprep.mubr.bf16.mxu0 %v249
      %411 = vmatmul.mubr.bf16.gmra.mrb[0].mxu0 %v248
      %v412 = vpop.f32.mrb[0].mxu0
      %v413 = vadd.f32 0.0, %v412
      %v414 = vpop.f32.mrb[0].mxu0
      %v415 = vpop.f32.mrb[0].mxu0
      %v416 = vadd.f32 0.0, %v415
      %v417 = vpop.f32.mrb[0].mxu0
      %418 = vdwg.mxu0
      %v419 = vpack.c.bf16 %v392, %v389
      %v420 = vpack.c.bf16 %v400, %v397
      %v421 = vpack.c.bf16 %v408, %v405
      %v422 = vpack.c.bf16 %v416, %v413
      %v423 = vld [vmem:[%s2] sm:$0xf]
      %v424 = vld [vmem:[%s2 + $0x4] sm:$0xf]
      %v425 = vld [vmem:[%s2 + $0x8] sm:$0x1]
      %v429 = vunpack.c.l.b16 %v423
      %v430 = vunpack.c.l.b16 %v424
      %v431 = vunpack.c.l.b16 %v425
      %v432 = vpack.c.b16 %v430, %v429
      %v433 = vpack.c.b16 %v431, %v431
      %vm435 = vcmask 138240
      %v437 = vsel %vm435, %v419, 0
      %v440 = vsel %vm435, %v420, 0
      %v443 = vsel %vm435, %v421, 0
      %v446 = vsel %vm435, %v422, 0
      %vm448 = vcmask 1040384
      %v449 = vsel 0, 4294967295, 65535
      %v450 = vsel %vm448, %v449, 0
      %v452 = vand.u32 %v433, %v450
      %454 = vmatprep.subr.bf16.mxu0 0
      %455 = vmatpush1.bf16.msra.mxu0 %v432
      %456 = vmatprep.subr.bf16.mxu0 0
      %457 = vmatpush1.bf16.msra.mxu0 %v452
      %458 = vmatprep.subr.bf16.mxu0 0
      %459 = vmatpush1.bf16.msra.mxu0 0
      %460 = vmatprep.subr.bf16.mxu0 0
      %461 = vmatpush1.bf16.msra.mxu0 0
      %462 = vmatprep.subr.bf16.mxu0 0
      %463 = vmatpush1.bf16.msra.mxu0 0
      %464 = vmatprep.subr.bf16.mxu0 0
      %465 = vmatpush1.bf16.msra.mxu0 0
      %466 = vmatprep.subr.bf16.mxu0 0
      %467 = vmatpush1.bf16.msra.mxu0 0
      %468 = vmatprep.subr.bf16.mxu0 0
      %469 = vmatpush1.bf16.msra.mxu0 0
      %470 = vmatprep.subr.bf16.mxu0 0
      %471 = vmatpush1.bf16.msra.mxu0 0
      %472 = vmatprep.subr.bf16.mxu0 0
      %473 = vmatpush1.bf16.msra.mxu0 0
      %474 = vmatprep.subr.bf16.mxu0 0
      %475 = vmatpush1.bf16.msra.mxu0 0
      %476 = vmatprep.subr.bf16.mxu0 0
      %477 = vmatpush1.bf16.msra.mxu0 0
      %478 = vmatprep.subr.bf16.mxu0 0
      %479 = vmatpush1.bf16.msra.mxu0 0
      %480 = vmatprep.subr.bf16.mxu0 0
      %481 = vmatpush1.bf16.msra.mxu0 0
      %482 = vmatprep.subr.bf16.mxu0 0
      %483 = vmatpush1.bf16.msra.mxu0 0
      %484 = vmatprep.subr.bf16.mxu0 0
      %485 = vmatpush1.bf16.msra.mxu0 0
      %486 = vmatprep.mubr.bf16.mxu0 0
      %487 = vmatmul.mubr.bf16.gmra.mrb[0].mxu0 %v437
      %v488 = vpop.f32.mrb[0].mxu0
      %v489 = vadd.f32 0.0, %v488
      %v490 = vpop.f32.mrb[0].mxu0
      %v491 = vpop.f32.mrb[0].mxu0
      %v492 = vadd.f32 0.0, %v491
      %v493 = vpop.f32.mrb[0].mxu0
      %494 = vmatprep.mubr.bf16.mxu0 0
      %495 = vmatmul.mubr.bf16.gmra.mrb[0].mxu0 %v440
      %v496 = vpop.f32.mrb[0].mxu0
      %v497 = vadd.f32 0.0, %v496
      %v498 = vpop.f32.mrb[0].mxu0
      %v499 = vpop.f32.mrb[0].mxu0
      %v500 = vadd.f32 0.0, %v499
      %v501 = vpop.f32.mrb[0].mxu0
      %502 = vmatprep.mubr.bf16.mxu0 0
      %503 = vmatmul.mubr.bf16.gmra.mrb[0].mxu0 %v443
      %v504 = vpop.f32.mrb[0].mxu0
      %v505 = vadd.f32 0.0, %v504
      %v506 = vpop.f32.mrb[0].mxu0
      %v507 = vpop.f32.mrb[0].mxu0
      %v508 = vadd.f32 0.0, %v507
      %v509 = vpop.f32.mrb[0].mxu0
      %510 = vmatprep.mubr.bf16.mxu0 0
      %511 = vmatmul.mubr.bf16.gmra.mrb[0].mxu0 %v446
      %v512 = vpop.f32.mrb[0].mxu0
      %v513 = vadd.f32 0.0, %v512
      %v514 = vpop.f32.mrb[0].mxu0
      %v515 = vpop.f32.mrb[0].mxu0
      %v516 = vadd.f32 0.0, %v515
      %v517 = vpop.f32.mrb[0].mxu0
      %518 = vdwg.mxu0
      %v519 = vpack.c.bf16 %v492, %v489
      %v520 = vpack.c.bf16 %v500, %v497
      %v521 = vpack.c.bf16 %v508, %v505
      %v522 = vpack.c.bf16 %v516, %v513
      %v527 = vunpack.c.l.b16 %v519
      %v528 = vunpack.c.h.b16 %v519
      %v529 = vunpack.c.l.b16 %v520
      %v530 = vunpack.c.h.b16 %v520
      %v531 = vunpack.c.l.b16 %v521
      %v532 = vunpack.c.h.b16 %v521
      %v533 = vunpack.c.l.b16 %v522
      %v534 = vunpack.c.h.b16 %v522
      %v535 = vpack.c.b16 %v527, %v527
      %v536 = vpack.c.b16 %v528, %v528
      %v537 = vpack.c.b16 %v529, %v529
      %v538 = vpack.c.b16 %v530, %v530
      %v539 = vpack.c.b16 %v531, %v531
      %v540 = vpack.c.b16 %v532, %v532
      %v541 = vpack.c.b16 %v533, %v533
      %v542 = vpack.c.b16 %v534, %v534
      %551 = vst [vmem:[%s175] sm:$0xf] %v535
      %552 = vst [vmem:[%s175 + $0x4] sm:$0xf] %v536
      %553 = vst [vmem:[%s175 + $0x8] sm:$0xf] %v537
      %554 = vst [vmem:[%s175 + $0xc] sm:$0xf] %v538
      %555 = vst [vmem:[%s175 + $0x10] sm:$0xf] %v539
      %556 = vst [vmem:[%s175 + $0x14] sm:$0xf] %v540
      %557 = vst [vmem:[%s175 + $0x18] sm:$0xf] %v541
      %558 = vst [vmem:[%s175 + $0x1c] sm:$0xf] %v542
      %s559 = smul.u32 8, %s14
      %p560 = scmp.lt.s32.totalorder %s559, 31
      %s561 = scalar_select %p560, %s559, 31
      %s562 = smul.addr %s561, 4
      %s563 = scalar_lea.vmem %s3, %s562
      // Predicated region
      $region33: #{gwnn_forward.2} parent=31 // pred_check
        %p564 = pneg %p100
      $region34: #{gwnn_forward.2} parent=31 // pred_check_branch
        %566 = sbr.rel (%p564) target = $region36
      $region35: #{gwnn_forward.2} parent=31 // pred_region
        %s567 = smul.u32 8, %s14
      $region36: #{gwnn_forward.2} parent=31 // pred_fallthru
        _
    $region32: #{gwnn_forward.2} parent=5 // pred_fallthru
      _
    %p568 = scmp.le.s32.totalorder 2, %s9
    // Predicated region
    $region37: #{gwnn_forward.2} parent=5 // pred_check
      %p569 = pneg %p568
    $region38: #{gwnn_forward.2} parent=5 // pred_check_branch
      %571 = sbr.rel (%p569) target = $region40
    $region39: #{gwnn_forward.2} parent=5 // pred_region
      %s572 = ssub.s32 %s9, 2
      // Predicated region
      $region41: #{gwnn_forward.2} parent=39 // pred_check
        %p573 = pneg %p106
      $region42: #{gwnn_forward.2} parent=39 // pred_check_branch
        %575 = sbr.rel (%p573) target = $region44
      $region43: #{gwnn_forward.2} parent=39 // pred_region
        %s576 = smul.u32 8, %s15
        %p577 = scmp.lt.s32.totalorder %s576, 31
        %s578 = scalar_select %p577, %s576, 31
        %s579 = smul.addr %s578, 4
        %s580 = scalar_lea.vmem %s3, %s579
      $region44: #{gwnn_forward.2} parent=39 // pred_fallthru
        _
    $region40: #{gwnn_forward.2} parent=5 // pred_fallthru
      _
  $region6: #{gwnn_forward.2} parent=0 // loop_footer
    %s13 = sadd.s32 1, %s9
  $region7: #{gwnn_forward.2} parent=0 // loop_footer_branch
    %8 = sbr.rel target = $region3
  $region8: #{gwnn_forward.2} parent=0 // loop_exit
    _

// kernel: gwnn_forward.3
$region0: #{gwnn_forward.3}
  #allocation0 [shape = 'u32[]', space=smem, size = 0x4, offset = 0x4, fixed_abs, tag = 'smem constant byte address 0x4 - core index']
  #allocation1 [shape = 'u32[144,128]{1,0:T(1,128)}', space=vmem, size = 0x12000, scoped, tag = 'internal scratch']
  %s0 = inlined_call_operand.vmem [shape: bf16[256,256], index: 0, kind: input, shape index: {}]
  %s1 = inlined_call_operand.vmem [shape: bf16[256,128], index: 1, kind: input, shape index: {}]
  %s2 = inlined_call_operand.vmem [shape: bf16[128,128], index: 2, kind: input, shape index: {}]
  %s3 = inlined_call_operand.vmem [shape: f32[1,128], index: 3, kind: input, shape index: {}]
  %s4 = inlined_call_operand.vmem [shape: f32[256,128], index: 4, kind: output, shape index: {}]
  %s5 = sld [smem:[#allocation0]]
  $region49: #{gwnn_forward.3} parent=0
    _
  %s7 = ssub.s32 1, %s5
  %s8 = scalar_select 0, %s7, %s5
  loop: start=0, step=1, limit=6
  $region2: #{gwnn_forward.3} parent=0 // loop_pre_header
    _
  $region3: #{gwnn_forward.3} parent=0 // loop_header
    %s10 = sphi 0, %s14
    %p11 = scmp.ge.s32.totalorder %s10, 6
    %s20 = sphi 0, %s22
    %s23 = sphi 0, %s20
    %s24 = sphi 0, %s23
    %s40 = sphi 0, %s24
    %s44 = sphi 0, %s44
    %s46 = sphi 0, %s44
    %s47 = sphi 0, %s46
    %s61 = sphi 0, %s47
    %s65 = sphi 0, %s65
    %s67 = sphi 0, %s65
    %s68 = sphi 0, %s67
    %s82 = sphi 0, %s68
    %s86 = sphi 0, %s86
    %s88 = sphi 0, %s86
    %s89 = sphi 0, %s88
    %s103 = sphi 0, %s89
    %s109 = sphi 0, %s111
    %s112 = sphi 0, %s109
    %s113 = sphi 0, %s112
    %s129 = sphi 0, %s113
  $region4: #{gwnn_forward.3} parent=0 // loop_header_branch
    %13 = sbr.rel (%p11) target = $region8
  $region5: #{gwnn_forward.3} parent=0 // loop_body
    %s15 = ssub.s32 %s10, 1
    %s16 = ssub.s32 %s10, 2
    %s17 = sadd.s32 %s10, 1
    %s18 = ssub.s32 %s10, %s17
    %p19 = scmp.eq.s32.totalorder %s18, 0
    %s21 = sadd.s32 %s20, 1
    %s22 = scalar_select %p19, %s20, %s21
    %p25 = pneg %p19
    %p26 = scmp.eq.s32.totalorder %s10, 3
    %p27 = por %p25, %p26
    %p28 = scmp.ne.s32.totalorder %s20, %s23
    %p29 = scmp.eq.s32.totalorder %s10, 0
    %p30 = por %p28, %p29
    %p31 = scmp.ne.s32.totalorder %s20, %s23
    %p32 = scmp.eq.s32.totalorder %s15, 3
    %p33 = por %p31, %p32
    %p34 = scmp.ne.s32.totalorder %s23, %s24
    %p35 = scmp.eq.s32.totalorder %s15, 0
    %p36 = por %p34, %p35
    %p37 = scmp.ne.s32.totalorder %s23, %s24
    %p38 = scmp.eq.s32.totalorder %s16, 3
    %p39 = por %p37, %p38
    %p41 = scmp.ne.s32.totalorder %s24, %s40
    %p42 = scmp.eq.s32.totalorder %s16, 0
    %p43 = por %p41, %p42
    %s45 = sadd.s32 %s44, 1
    %p48 = scmp.eq.s32.totalorder %s10, 3
    %p49 = scmp.ne.s32.totalorder %s44, %s46
    %p50 = scmp.eq.s32.totalorder %s10, 0
    %p51 = por %p49, %p50
    %p52 = scmp.ne.s32.totalorder %s44, %s46
    %p53 = scmp.eq.s32.totalorder %s15, 3
    %p54 = por %p52, %p53
    %p55 = scmp.ne.s32.totalorder %s46, %s47
    %p56 = scmp.eq.s32.totalorder %s15, 0
    %p57 = por %p55, %p56
    %p58 = scmp.ne.s32.totalorder %s46, %s47
    %p59 = scmp.eq.s32.totalorder %s16, 3
    %p60 = por %p58, %p59
    %p62 = scmp.ne.s32.totalorder %s47, %s61
    %p63 = scmp.eq.s32.totalorder %s16, 0
    %p64 = por %p62, %p63
    %s66 = sadd.s32 %s65, 1
    %p69 = scmp.eq.s32.totalorder %s10, 3
    %p70 = scmp.ne.s32.totalorder %s65, %s67
    %p71 = scmp.eq.s32.totalorder %s10, 0
    %p72 = por %p70, %p71
    %p73 = scmp.ne.s32.totalorder %s65, %s67
    %p74 = scmp.eq.s32.totalorder %s15, 3
    %p75 = por %p73, %p74
    %p76 = scmp.ne.s32.totalorder %s67, %s68
    %p77 = scmp.eq.s32.totalorder %s15, 0
    %p78 = por %p76, %p77
    %p79 = scmp.ne.s32.totalorder %s67, %s68
    %p80 = scmp.eq.s32.totalorder %s16, 3
    %p81 = por %p79, %p80
    %p83 = scmp.ne.s32.totalorder %s68, %s82
    %p84 = scmp.eq.s32.totalorder %s16, 0
    %p85 = por %p83, %p84
    %s87 = sadd.s32 %s86, 1
    %p90 = scmp.eq.s32.totalorder %s10, 3
    %p91 = scmp.ne.s32.totalorder %s86, %s88
    %p92 = scmp.eq.s32.totalorder %s10, 0
    %p93 = por %p91, %p92
    %p94 = scmp.ne.s32.totalorder %s86, %s88
    %p95 = scmp.eq.s32.totalorder %s15, 3
    %p96 = por %p94, %p95
    %p97 = scmp.ne.s32.totalorder %s88, %s89
    %p98 = scmp.eq.s32.totalorder %s15, 0
    %p99 = por %p97, %p98
    %p100 = scmp.ne.s32.totalorder %s88, %s89
    %p101 = scmp.eq.s32.totalorder %s16, 3
    %p102 = por %p100, %p101
    %p104 = scmp.ne.s32.totalorder %s89, %s103
    %p105 = scmp.eq.s32.totalorder %s16, 0
    %p106 = por %p104, %p105
    %s107 = ssub.s32 %s10, %s17
    %p108 = scmp.eq.s32.totalorder %s107, 0
    %s110 = sadd.s32 %s109, 1
    %s111 = scalar_select %p108, %s109, %s110
    %p114 = pneg %p108
    %p115 = scmp.eq.s32.totalorder %s10, 3
    %p116 = por %p114, %p115
    %p117 = scmp.ne.s32.totalorder %s109, %s112
    %p118 = scmp.eq.s32.totalorder %s10, 0
    %p119 = por %p117, %p118
    %p120 = scmp.ne.s32.totalorder %s109, %s112
    %p121 = scmp.eq.s32.totalorder %s15, 3
    %p122 = por %p120, %p121
    %p123 = scmp.ne.s32.totalorder %s112, %s113
    %p124 = scmp.eq.s32.totalorder %s15, 0
    %p125 = por %p123, %p124
    %p126 = scmp.ne.s32.totalorder %s112, %s113
    %p127 = scmp.eq.s32.totalorder %s16, 3
    %p128 = por %p126, %p127
    %p130 = scmp.ne.s32.totalorder %s113, %s129
    %p131 = scmp.eq.s32.totalorder %s16, 0
    %p132 = por %p130, %p131
    %p133 = scmp.le.s32.totalorder 1, %s10
    %p134 = scmp.lt.s32.totalorder %s10, 5
    %p135 = pnand %p133, %p134
    %p136 = pneg %p135
    // Predicated region
    $region9: #{gwnn_forward.3} parent=5 // pred_check
      _
    $region10: #{gwnn_forward.3} parent=5 // pred_check_branch
      %138 = sbr.rel (%p135) target = $region12
    $region11: #{gwnn_forward.3} parent=5 // pred_region
      %s139 = ssub.s32 %s10, 1
      // Predicated region
      $region13: #{gwnn_forward.3} parent=11 // pred_check
        %p140 = pneg %p57
      $region14: #{gwnn_forward.3} parent=11 // pred_check_branch
        %142 = sbr.rel (%p140) target = $region16
      $region15: #{gwnn_forward.3} parent=11 // pred_region
        _
      $region16: #{gwnn_forward.3} parent=11 // pred_fallthru
        _
      // Predicated region
      $region17: #{gwnn_forward.3} parent=11 // pred_check
        %p143 = pneg %p78
      $region18: #{gwnn_forward.3} parent=11 // pred_check_branch
        %145 = sbr.rel (%p143) target = $region20
      $region19: #{gwnn_forward.3} parent=11 // pred_region
        _
      $region20: #{gwnn_forward.3} parent=11 // pred_fallthru
        _
      // Predicated region
      $region21: #{gwnn_forward.3} parent=11 // pred_check
        %p146 = pneg %p99
      $region22: #{gwnn_forward.3} parent=11 // pred_check_branch
        %148 = sbr.rel (%p146) target = $region24
      $region23: #{gwnn_forward.3} parent=11 // pred_region
        _
      $region24: #{gwnn_forward.3} parent=11 // pred_fallthru
        _
    $region12: #{gwnn_forward.3} parent=5 // pred_fallthru
      _
    %p149 = scmp.lt.s32.totalorder %s10, 4
    // Predicated region
    $region25: #{gwnn_forward.3} parent=5 // pred_check
      %p150 = pneg %p149
    $region26: #{gwnn_forward.3} parent=5 // pred_check_branch
      %152 = sbr.rel (%p150) target = $region28
    $region27: #{gwnn_forward.3} parent=5 // pred_region
      // Predicated region
      $region29: #{gwnn_forward.3} parent=27 // pred_check
        %p153 = pneg %p30
      $region30: #{gwnn_forward.3} parent=27 // pred_check_branch
        %155 = sbr.rel (%p153) target = $region32
      $region31: #{gwnn_forward.3} parent=27 // pred_region
        %s156 = smul.u32 8, %s10
        %p157 = scmp.lt.s32.totalorder %s156, 31
        %s158 = scalar_select %p157, %s156, 31
        %s159 = smul.addr %s158, 2
        %s160 = smul.addr %s159, 4
        %s161 = scalar_lea.vmem %s0, %s160
        %s162 = smul.u32 8, %s10
      $region32: #{gwnn_forward.3} parent=27 // pred_fallthru
        _
    $region28: #{gwnn_forward.3} parent=5 // pred_fallthru
      _
    %p163 = scmp.le.s32.totalorder 1, %s10
    %p164 = scmp.lt.s32.totalorder %s10, 5
    %p165 = pnand %p163, %p164
    %p166 = pneg %p165
    // Predicated region
    $region33: #{gwnn_forward.3} parent=5 // pred_check
      _
    $region34: #{gwnn_forward.3} parent=5 // pred_check_branch
      %168 = sbr.rel (%p165) target = $region36
    $region35: #{gwnn_forward.3} parent=5 // pred_region
      %s169 = ssub.s32 %s10, 1
      %s170 = smul.u32 8, %s15
      %p171 = scmp.lt.s32.totalorder %s170, 31
      %s172 = scalar_select %p171, %s170, 31
      %s173 = smul.addr %s172, 2
      %s174 = smul.addr %s173, 4
      %s175 = scalar_lea.vmem %s0, %s174
      %p176 = pneg %p36
      %p177 = pneg %p33
      %p178 = pneg %p57
      %p179 = pneg %p54
      %p180 = pneg %p78
      %p181 = pneg %p75
      %p182 = pneg %p99
      %p183 = pneg %p96
      %p184 = pneg %p125
      %p185 = pneg %p122
      %s186 = smul.u32 8, %s15
      %p187 = scmp.lt.s32.totalorder %s186, 31
      %s188 = scalar_select %p187, %s186, 31
      %s189 = smul.addr %s188, 8
      %s190 = scalar_lea.vmem %s4, %s189
      %s191 = smul.u32 8, %s15
      %p192 = scmp.lt.s32.totalorder %s191, 31
      %s193 = scalar_select %p192, %s191, 31
      %s194 = smul.addr %s193, 2
      %s195 = smul.addr %s194, 4
      %s196 = scalar_lea.vmem %s0, %s195
      %s197 = smul.u32 8, %s15
      %s198 = smul.u32 8, %s15
      %p199 = scmp.lt.s32.totalorder %s198, 31
      %s200 = scalar_select %p199, %s198, 31
      %s201 = smul.addr %s200, 8
      %s202 = scalar_lea.vmem %s4, %s201
      %s203 = smul.u32 8, %s15
      %v205 = vld [vmem:[%s196] sm:$0xff]
      %v206 = vld [vmem:[%s196 + $0x8] sm:$0xff]
      %v207 = vld [vmem:[%s196 + $0x10] sm:$0xff]
      %v208 = vld [vmem:[%s196 + $0x18] sm:$0xff]
      %v209 = vld [vmem:[%s196 + $0x20] sm:$0xff]
      %v210 = vld [vmem:[%s196 + $0x28] sm:$0xff]
      %v211 = vld [vmem:[%s196 + $0x30] sm:$0xff]
      %v212 = vld [vmem:[%s196 + $0x38] sm:$0xff]
      %v213 = vld [vmem:[%s1] sm:$0xf]
      %v214 = vld [vmem:[%s1 + $0x4] sm:$0xf]
      %v215 = vld [vmem:[%s1 + $0x8] sm:$0xf]
      %v216 = vld [vmem:[%s1 + $0xc] sm:$0xf]
      %v217 = vld [vmem:[%s1 + $0x10] sm:$0xf]
      %v218 = vld [vmem:[%s1 + $0x14] sm:$0xf]
      %v219 = vld [vmem:[%s1 + $0x18] sm:$0xf]
      %v220 = vld [vmem:[%s1 + $0x1c] sm:$0xf]
      %v221 = vld [vmem:[%s1 + $0x20] sm:$0xf]
      %v222 = vld [vmem:[%s1 + $0x24] sm:$0xf]
      %v223 = vld [vmem:[%s1 + $0x28] sm:$0xf]
      %v224 = vld [vmem:[%s1 + $0x2c] sm:$0xf]
      %v225 = vld [vmem:[%s1 + $0x30] sm:$0xf]
      %v226 = vld [vmem:[%s1 + $0x34] sm:$0xf]
      %v227 = vld [vmem:[%s1 + $0x38] sm:$0xf]
      %v228 = vld [vmem:[%s1 + $0x3c] sm:$0xf]
      %v229 = vld [vmem:[%s1 + $0x40] sm:$0xf]
      %v230 = vld [vmem:[%s1 + $0x44] sm:$0xf]
      %v231 = vld [vmem:[%s1 + $0x48] sm:$0xf]
      %v232 = vld [vmem:[%s1 + $0x4c] sm:$0xf]
      %v233 = vld [vmem:[%s1 + $0x50] sm:$0xf]
      %v234 = vld [vmem:[%s1 + $0x54] sm:$0xf]
      %v235 = vld [vmem:[%s1 + $0x58] sm:$0xf]
      %v236 = vld [vmem:[%s1 + $0x5c] sm:$0xf]
      %v237 = vld [vmem:[%s1 + $0x60] sm:$0xf]
      %v238 = vld [vmem:[%s1 + $0x64] sm:$0xf]
      %v239 = vld [vmem:[%s1 + $0x68] sm:$0xf]
      %v240 = vld [vmem:[%s1 + $0x6c] sm:$0xf]
      %v241 = vld [vmem:[%s1 + $0x70] sm:$0xf]
      %v242 = vld [vmem:[%s1 + $0x74] sm:$0xf]
      %v243 = vld [vmem:[%s1 + $0x78] sm:$0xf]
      %v244 = vld [vmem:[%s1 + $0x7c] sm:$0xf]
      %v253 = vunpack.c.l.b16 %v205
      %v254 = vunpack.c.h.b16 %v205
      %v255 = vunpack.c.l.b16 %v206
      %v256 = vunpack.c.h.b16 %v206
      %v257 = vunpack.c.l.b16 %v207
      %v258 = vunpack.c.h.b16 %v207
      %v259 = vunpack.c.l.b16 %v208
      %v260 = vunpack.c.h.b16 %v208
      %v261 = vunpack.c.l.b16 %v209
      %v262 = vunpack.c.h.b16 %v209
      %v263 = vunpack.c.l.b16 %v210
      %v264 = vunpack.c.h.b16 %v210
      %v265 = vunpack.c.l.b16 %v211
      %v266 = vunpack.c.h.b16 %v211
      %v267 = vunpack.c.l.b16 %v212
      %v268 = vunpack.c.h.b16 %v212
      %v269 = vpack.c.b16 %v255, %v253
      %v270 = vpack.c.b16 %v256, %v254
      %v271 = vpack.c.b16 %v259, %v257
      %v272 = vpack.c.b16 %v260, %v258
      %v273 = vpack.c.b16 %v263, %v261
      %v274 = vpack.c.b16 %v264, %v262
      %v275 = vpack.c.b16 %v267, %v265
      %v276 = vpack.c.b16 %v268, %v266
      %v317 = vunpack.c.l.b16 %v213
      %v318 = vunpack.c.l.b16 %v214
      %v319 = vunpack.c.l.b16 %v215
      %v320 = vunpack.c.l.b16 %v216
      %v321 = vunpack.c.l.b16 %v217
      %v322 = vunpack.c.l.b16 %v218
      %v323 = vunpack.c.l.b16 %v219
      %v324 = vunpack.c.l.b16 %v220
      %v325 = vunpack.c.l.b16 %v221
      %v326 = vunpack.c.l.b16 %v222
      %v327 = vunpack.c.l.b16 %v223
      %v328 = vunpack.c.l.b16 %v224
      %v329 = vunpack.c.l.b16 %v225
      %v330 = vunpack.c.l.b16 %v226
      %v331 = vunpack.c.l.b16 %v227
      %v332 = vunpack.c.l.b16 %v228
      %v333 = vunpack.c.l.b16 %v229
      %v334 = vunpack.c.l.b16 %v230
      %v335 = vunpack.c.l.b16 %v231
      %v336 = vunpack.c.l.b16 %v232
      %v337 = vunpack.c.l.b16 %v233
      %v338 = vunpack.c.l.b16 %v234
      %v339 = vunpack.c.l.b16 %v235
      %v340 = vunpack.c.l.b16 %v236
      %v341 = vunpack.c.l.b16 %v237
      %v342 = vunpack.c.l.b16 %v238
      %v343 = vunpack.c.l.b16 %v239
      %v344 = vunpack.c.l.b16 %v240
      %v345 = vunpack.c.l.b16 %v241
      %v346 = vunpack.c.l.b16 %v242
      %v347 = vunpack.c.l.b16 %v243
      %v348 = vunpack.c.l.b16 %v244
      %v349 = vpack.c.b16 %v318, %v317
      %v350 = vpack.c.b16 %v320, %v319
      %v351 = vpack.c.b16 %v322, %v321
      %v352 = vpack.c.b16 %v324, %v323
      %v353 = vpack.c.b16 %v326, %v325
      %v354 = vpack.c.b16 %v328, %v327
      %v355 = vpack.c.b16 %v330, %v329
      %v356 = vpack.c.b16 %v332, %v331
      %v357 = vpack.c.b16 %v334, %v333
      %v358 = vpack.c.b16 %v336, %v335
      %v359 = vpack.c.b16 %v338, %v337
      %v360 = vpack.c.b16 %v340, %v339
      %v361 = vpack.c.b16 %v342, %v341
      %v362 = vpack.c.b16 %v344, %v343
      %v363 = vpack.c.b16 %v346, %v345
      %v364 = vpack.c.b16 %v348, %v347
      %381 = vmatprep.subr.bf16.mxu0 0
      %382 = vmatpush1.bf16.msra.mxu0 %v349
      %383 = vmatprep.subr.bf16.mxu0 0
      %384 = vmatpush1.bf16.msra.mxu0 %v350
      %385 = vmatprep.subr.bf16.mxu0 0
      %386 = vmatpush1.bf16.msra.mxu0 %v351
      %387 = vmatprep.subr.bf16.mxu0 0
      %388 = vmatpush1.bf16.msra.mxu0 %v352
      %389 = vmatprep.subr.bf16.mxu0 0
      %390 = vmatpush1.bf16.msra.mxu0 %v353
      %391 = vmatprep.subr.bf16.mxu0 0
      %392 = vmatpush1.bf16.msra.mxu0 %v354
      %393 = vmatprep.subr.bf16.mxu0 0
      %394 = vmatpush1.bf16.msra.mxu0 %v355
      %395 = vmatprep.subr.bf16.mxu0 0
      %396 = vmatpush1.bf16.msra.mxu0 %v356
      %397 = vmatprep.subr.bf16.mxu0 0
      %398 = vmatpush1.bf16.msra.mxu0 %v357
      %399 = vmatprep.subr.bf16.mxu0 0
      %400 = vmatpush1.bf16.msra.mxu0 %v358
      %401 = vmatprep.subr.bf16.mxu0 0
      %402 = vmatpush1.bf16.msra.mxu0 %v359
      %403 = vmatprep.subr.bf16.mxu0 0
      %404 = vmatpush1.bf16.msra.mxu0 %v360
      %405 = vmatprep.subr.bf16.mxu0 0
      %406 = vmatpush1.bf16.msra.mxu0 %v361
      %407 = vmatprep.subr.bf16.mxu0 0
      %408 = vmatpush1.bf16.msra.mxu0 %v362
      %409 = vmatprep.subr.bf16.mxu0 0
      %410 = vmatpush1.bf16.msra.mxu0 %v363
      %411 = vmatprep.subr.bf16.mxu0 0
      %412 = vmatpush1.bf16.msra.mxu0 %v364
      %413 = vmatprep.mubr.bf16.mxu0 %v270
      %414 = vmatmul.mubr.bf16.gmra.mrb[0].mxu0 %v269
      %v415 = vpop.f32.mrb[0].mxu0
      %v416 = vadd.f32 0.0, %v415
      %v417 = vpop.f32.mrb[0].mxu0
      %v418 = vpop.f32.mrb[0].mxu0
      %v419 = vadd.f32 0.0, %v418
      %v420 = vpop.f32.mrb[0].mxu0
      %421 = vmatprep.mubr.bf16.mxu0 %v272
      %422 = vmatmul.mubr.bf16.gmra.mrb[0].mxu0 %v271
      %v423 = vpop.f32.mrb[0].mxu0
      %v424 = vadd.f32 0.0, %v423
      %v425 = vpop.f32.mrb[0].mxu0
      %v426 = vpop.f32.mrb[0].mxu0
      %v427 = vadd.f32 0.0, %v426
      %v428 = vpop.f32.mrb[0].mxu0
      %429 = vmatprep.mubr.bf16.mxu0 %v274
      %430 = vmatmul.mubr.bf16.gmra.mrb[0].mxu0 %v273
      %v431 = vpop.f32.mrb[0].mxu0
      %v432 = vadd.f32 0.0, %v431
      %v433 = vpop.f32.mrb[0].mxu0
      %v434 = vpop.f32.mrb[0].mxu0
      %v435 = vadd.f32 0.0, %v434
      %v436 = vpop.f32.mrb[0].mxu0
      %437 = vmatprep.mubr.bf16.mxu0 %v276
      %438 = vmatmul.mubr.bf16.gmra.mrb[0].mxu0 %v275
      %v439 = vpop.f32.mrb[0].mxu0
      %v440 = vadd.f32 0.0, %v439
      %v441 = vpop.f32.mrb[0].mxu0
      %v442 = vpop.f32.mrb[0].mxu0
      %v443 = vadd.f32 0.0, %v442
      %v444 = vpop.f32.mrb[0].mxu0
      %445 = vdwg.mxu0
      %v446 = vmax.f32 %v416, 0.0
      %v447 = vmax.f32 %v419, 0.0
      %v448 = vmax.f32 %v424, 0.0
      %v449 = vmax.f32 %v427, 0.0
      %v450 = vmax.f32 %v432, 0.0
      %v451 = vmax.f32 %v435, 0.0
      %v452 = vmax.f32 %v440, 0.0
      %v453 = vmax.f32 %v443, 0.0
      %v454 = vpack.c.bf16 %v447, %v446
      %v455 = vpack.c.bf16 %v449, %v448
      %v456 = vpack.c.bf16 %v451, %v450
      %v457 = vpack.c.bf16 %v453, %v452
      %v458 = vld [vmem:[%s2] sm:$0xf]
      %v459 = vld [vmem:[%s2 + $0x4] sm:$0xf]
      %v460 = vld [vmem:[%s2 + $0x8] sm:$0xf]
      %v461 = vld [vmem:[%s2 + $0xc] sm:$0xf]
      %v462 = vld [vmem:[%s2 + $0x10] sm:$0xf]
      %v463 = vld [vmem:[%s2 + $0x14] sm:$0xf]
      %v464 = vld [vmem:[%s2 + $0x18] sm:$0xf]
      %v465 = vld [vmem:[%s2 + $0x1c] sm:$0xf]
      %v466 = vld [vmem:[%s2 + $0x20] sm:$0xf]
      %v467 = vld [vmem:[%s2 + $0x24] sm:$0xf]
      %v468 = vld [vmem:[%s2 + $0x28] sm:$0xf]
      %v469 = vld [vmem:[%s2 + $0x2c] sm:$0xf]
      %v470 = vld [vmem:[%s2 + $0x30] sm:$0xf]
      %v471 = vld [vmem:[%s2 + $0x34] sm:$0xf]
      %v472 = vld [vmem:[%s2 + $0x38] sm:$0xf]
      %v473 = vld [vmem:[%s2 + $0x3c] sm:$0xf]
      %v474 = vld [vmem:[%s3] sm:$0x1]
      %v476 = vlaneseq
      %v477 = vshrl.u32 %v476, 7
      %v478 = vsub.s32 0, %v477
      %v479 = vrot.slane %v474, %v478
      %v497 = vunpack.c.l.b16 %v458
      %v498 = vunpack.c.l.b16 %v459
      %v499 = vunpack.c.l.b16 %v460
      %v500 = vunpack.c.l.b16 %v461
      %v501 = vunpack.c.l.b16 %v462
      %v502 = vunpack.c.l.b16 %v463
      %v503 = vunpack.c.l.b16 %v464
      %v504 = vunpack.c.l.b16 %v465
      %v505 = vunpack.c.l.b16 %v466
      %v506 = vunpack.c.l.b16 %v467
      %v507 = vunpack.c.l.b16 %v468
      %v508 = vunpack.c.l.b16 %v469
      %v509 = vunpack.c.l.b16 %v470
      %v510 = vunpack.c.l.b16 %v471
      %v511 = vunpack.c.l.b16 %v472
      %v512 = vunpack.c.l.b16 %v473
      %v513 = vpack.c.b16 %v498, %v497
      %v514 = vpack.c.b16 %v500, %v499
      %v515 = vpack.c.b16 %v502, %v501
      %v516 = vpack.c.b16 %v504, %v503
      %v517 = vpack.c.b16 %v506, %v505
      %v518 = vpack.c.b16 %v508, %v507
      %v519 = vpack.c.b16 %v510, %v509
      %v520 = vpack.c.b16 %v512, %v511
      %529 = vmatprep.subr.bf16.mxu0 0
      %530 = vmatpush1.bf16.msra.mxu0 %v513
      %531 = vmatprep.subr.bf16.mxu0 0
      %532 = vmatpush1.bf16.msra.mxu0 %v514
      %533 = vmatprep.subr.bf16.mxu0 0
      %534 = vmatpush1.bf16.msra.mxu0 %v515
      %535 = vmatprep.subr.bf16.mxu0 0
      %536 = vmatpush1.bf16.msra.mxu0 %v516
      %537 = vmatprep.subr.bf16.mxu0 0
      %538 = vmatpush1.bf16.msra.mxu0 %v517
      %539 = vmatprep.subr.bf16.mxu0 0
      %540 = vmatpush1.bf16.msra.mxu0 %v518
      %541 = vmatprep.subr.bf16.mxu0 0
      %542 = vmatpush1.bf16.msra.mxu0 %v519
      %543 = vmatprep.subr.bf16.mxu0 0
      %544 = vmatpush1.bf16.msra.mxu0 %v520
      %545 = vmatprep.subr.bf16.mxu0 0
      %546 = vmatpush1.bf16.msra.mxu0 0
      %547 = vmatprep.subr.bf16.mxu0 0
      %548 = vmatpush1.bf16.msra.mxu0 0
      %549 = vmatprep.subr.bf16.mxu0 0
      %550 = vmatpush1.bf16.msra.mxu0 0
      %551 = vmatprep.subr.bf16.mxu0 0
      %552 = vmatpush1.bf16.msra.mxu0 0
      %553 = vmatprep.subr.bf16.mxu0 0
      %554 = vmatpush1.bf16.msra.mxu0 0
      %555 = vmatprep.subr.bf16.mxu0 0
      %556 = vmatpush1.bf16.msra.mxu0 0
      %557 = vmatprep.subr.bf16.mxu0 0
      %558 = vmatpush1.bf16.msra.mxu0 0
      %559 = vmatprep.subr.bf16.mxu0 0
      %560 = vmatpush1.bf16.msra.mxu0 0
      %561 = vmatprep.mubr.bf16.mxu0 0
      %562 = vmatmul.mubr.bf16.gmra.mrb[0].mxu0 %v454
      %v563 = vpop.f32.mrb[0].mxu0
      %v564 = vadd.f32 %v479, %v563
      %v565 = vpop.f32.mrb[0].mxu0
      %v566 = vpop.f32.mrb[0].mxu0
      %v567 = vadd.f32 %v479, %v566
      %v568 = vpop.f32.mrb[0].mxu0
      %569 = vmatprep.mubr.bf16.mxu0 0
      %570 = vmatmul.mubr.bf16.gmra.mrb[0].mxu0 %v455
      %v571 = vpop.f32.mrb[0].mxu0
      %v572 = vadd.f32 %v479, %v571
      %v573 = vpop.f32.mrb[0].mxu0
      %v574 = vpop.f32.mrb[0].mxu0
      %v575 = vadd.f32 %v479, %v574
      %v576 = vpop.f32.mrb[0].mxu0
      %577 = vmatprep.mubr.bf16.mxu0 0
      %578 = vmatmul.mubr.bf16.gmra.mrb[0].mxu0 %v456
      %v579 = vpop.f32.mrb[0].mxu0
      %v580 = vadd.f32 %v479, %v579
      %v581 = vpop.f32.mrb[0].mxu0
      %v582 = vpop.f32.mrb[0].mxu0
      %v583 = vadd.f32 %v479, %v582
      %v584 = vpop.f32.mrb[0].mxu0
      %585 = vmatprep.mubr.bf16.mxu0 0
      %586 = vmatmul.mubr.bf16.gmra.mrb[0].mxu0 %v457
      %v587 = vpop.f32.mrb[0].mxu0
      %v588 = vadd.f32 %v479, %v587
      %v589 = vpop.f32.mrb[0].mxu0
      %v590 = vpop.f32.mrb[0].mxu0
      %v591 = vadd.f32 %v479, %v590
      %v592 = vpop.f32.mrb[0].mxu0
      %593 = vdwg.mxu0
      %594 = vst [vmem:[%s202] sm:$0xff] %v564
      %595 = vst [vmem:[%s202 + $0x8] sm:$0xff] %v567
      %596 = vst [vmem:[%s202 + $0x10] sm:$0xff] %v572
      %597 = vst [vmem:[%s202 + $0x18] sm:$0xff] %v575
      %598 = vst [vmem:[%s202 + $0x20] sm:$0xff] %v580
      %599 = vst [vmem:[%s202 + $0x28] sm:$0xff] %v583
      %600 = vst [vmem:[%s202 + $0x30] sm:$0xff] %v588
      %601 = vst [vmem:[%s202 + $0x38] sm:$0xff] %v591
      %s602 = smul.u32 8, %s15
      %p603 = scmp.lt.s32.totalorder %s602, 31
      %s604 = scalar_select %p603, %s602, 31
      %s605 = smul.addr %s604, 8
      %s606 = scalar_lea.vmem %s4, %s605
      // Predicated region
      $region37: #{gwnn_forward.3} parent=35 // pred_check
        %p607 = pneg %p122
      $region38: #{gwnn_forward.3} parent=35 // pred_check_branch
        %609 = sbr.rel (%p607) target = $region40
      $region39: #{gwnn_forward.3} parent=35 // pred_region
        %s610 = smul.u32 8, %s15
      $region40: #{gwnn_forward.3} parent=35 // pred_fallthru
        _
    $region36: #{gwnn_forward.3} parent=5 // pred_fallthru
      _
    %p611 = scmp.le.s32.totalorder 2, %s10
    // Predicated region
    $region41: #{gwnn_forward.3} parent=5 // pred_check
      %p612 = pneg %p611
    $region42: #{gwnn_forward.3} parent=5 // pred_check_branch
      %614 = sbr.rel (%p612) target = $region44
    $region43: #{gwnn_forward.3} parent=5 // pred_region
      %s615 = ssub.s32 %s10, 2
      // Predicated region
      $region45: #{gwnn_forward.3} parent=43 // pred_check
        %p616 = pneg %p128
      $region46: #{gwnn_forward.3} parent=43 // pred_check_branch
        %618 = sbr.rel (%p616) target = $region48
      $region47: #{gwnn_forward.3} parent=43 // pred_region
        %s619 = smul.u32 8, %s16
        %p620 = scmp.lt.s32.totalorder %s619, 31
        %s621 = scalar_select %p620, %s619, 31
        %s622 = smul.addr %s621, 8
        %s623 = scalar_lea.vmem %s4, %s622
      $region48: #{gwnn_forward.3} parent=43 // pred_fallthru
        _
    $region44: #{gwnn_forward.3} parent=5 // pred_fallthru
      _
  $region6: #{gwnn_forward.3} parent=0 // loop_footer
    %s14 = sadd.s32 1, %s10
  $region7: #{gwnn_forward.3} parent=0 // loop_footer_branch
    %9 = sbr.rel target = $region3
  $region8: #{gwnn_forward.3} parent=0 // loop_exit
    _

</llo_original>
